<compile_context>
chip_gen: v5e
topology: v5e:2x2
jax: 0.10.0
libtpu: 0.0.40
codegen_flags: <defaults>
</compile_context>

<pallas_src>
import functools

import jax
import jax.numpy as jnp
from jax.experimental import pallas as pl
from jax.experimental.pallas import tpu as pltpu

GAMMA = 1.5
ALPHA = 0.25
LANES = 128
NUM_PARTITIONS = 2      # exploits v7x's 2 TensorCores; harmless on 1-TC chips
MAX_ROW_TILE = 2048     # 2048 * 128 * 4B = 1 MiB per input per pipeline buffer


def _round_up(x, m):
    return (x + m - 1) // m * m


def _focal_loss_kernel(pred_ref, true_ref, out_ref, *,
                       gamma, alpha, total, tiles_per_part):
    p = pl.program_id(0)      # partition axis ("parallel")
    t = pl.program_id(1)      # streaming/reduction axis ("arbitrary")

    # out_ref is this partition's (8, 128) f32 accumulator; it stays resident
    # in VMEM across the t axis (index_map does not depend on t).
    @pl.when(t == 0)
    def _():
        out_ref[...] = jnp.zeros_like(out_ref)

    x = pred_ref[...].astype(jnp.float32)
    y = true_ref[...].astype(jnp.float32)

    # One exp feeds both the stable BCE-with-logits log-term and the sigmoid.
    e = jnp.exp(-jnp.abs(x))                            # EUP: exp
    bce = jnp.maximum(x, 0.0) - x * y + jnp.log1p(e)    # EUP: log
    inv = 1.0 / (1.0 + e)                               # EUP: recip
    sig = jnp.where(x >= 0.0, inv, e * inv)             # == sigmoid(x)

    p_t = y * sig + (1.0 - y) * (1.0 - sig)
    alpha_factor = y * alpha + (1.0 - y) * (1.0 - alpha)
    u = 1.0 - p_t
    if gamma == 1.5:
        mod = u * jnp.sqrt(u)      # u**1.5 without pow's log+exp (and no log(0))
    elif gamma == 2.0:
        mod = u * u
    elif gamma == 1.0:
        mod = u
    else:
        mod = u ** gamma
    loss = bce * alpha_factor * mod

    # Mask the padded tail: zero any element whose flat index >= true count.
    # (int32 flat index: fine for < ~2.1e9 elements, plenty for loss tensors.)
    rt, lanes = loss.shape
    row_idx = jax.lax.broadcasted_iota(jnp.int32, (rt, lanes), 0)
    lane_idx = jax.lax.broadcasted_iota(jnp.int32, (rt, lanes), 1)
    base_row = (p * tiles_per_part + t) * rt
    flat_idx = (base_row + row_idx) * lanes + lane_idx
    loss = jnp.where(flat_idx < total, loss, 0.0)

    # Vector accumulate: VALU adds only; the cross-lane/sublane reduce of the
    # tiny (NUM_PARTITIONS*8, 128) result happens once in the wrapper.
    out_ref[...] += loss.reshape(rt // 8, 8, lanes).sum(axis=0)


def focal_loss(pred, true, gamma=GAMMA, alpha=ALPHA, max_row_tile=MAX_ROW_TILE):
    """Focal loss with BCE-with-logits base loss, reduction='mean'.

    pred, true: same shape (e.g. NCHW logits / targets); f32 or bf16.
    Returns a scalar float32.
    """
    assert pred.shape == true.shape
    total = pred.size
    assert total > 0

    rows = pl.cdiv(total, LANES)
    max_row_tile = max(8, (max_row_tile // 8) * 8)
    # Row tile: multiple of 8 (f32 sublane tile), as large as sensible.
    row_tile = min(max_row_tile, _round_up(rows, 8))
    tiles_total = pl.cdiv(rows, row_tile)
    tiles_per_part = pl.cdiv(tiles_total, NUM_PARTITIONS)
    padded_rows = row_tile * tiles_per_part * NUM_PARTITIONS
    padded_total = padded_rows * LANES

    pred_flat = pred.reshape(-1)
    true_flat = true.reshape(-1)
    pad = padded_total - total
    if pad:
        pred_flat = jnp.pad(pred_flat, (0, pad))
        true_flat = jnp.pad(true_flat, (0, pad))
    pred2d = pred_flat.reshape(padded_rows, LANES)
    true2d = true_flat.reshape(padded_rows, LANES)

    kernel = functools.partial(
        _focal_loss_kernel,
        gamma=gamma, alpha=alpha, total=total, tiles_per_part=tiles_per_part)

    in_map = lambda p, t: (p * tiles_per_part + t, 0)
    # Tip: if DMA is still exposed after enlarging the tile, sweep
    # pipeline_mode=pl.Buffered(3) on the two input BlockSpecs.
    partials = pl.pallas_call(
        kernel,
        out_shape=jax.ShapeDtypeStruct((NUM_PARTITIONS * 8, LANES), jnp.float32),
        grid=(NUM_PARTITIONS, tiles_per_part),
        in_specs=[
            pl.BlockSpec((row_tile, LANES), in_map),
            pl.BlockSpec((row_tile, LANES), in_map),
        ],
        out_specs=pl.BlockSpec((8, LANES), lambda p, t: (p, 0)),
        compiler_params=pltpu.CompilerParams(
            dimension_semantics=("parallel", "arbitrary"),
        ),
    )(pred2d, true2d)

    # reduction == 'mean': tiny final reduce + divide in XLA.
    return jnp.sum(partials) / jnp.float32(total)


def _focal_loss_ref(pred, true, gamma=GAMMA, alpha=ALPHA):
    x = pred.astype(jnp.float32)
    y = true.astype(jnp.float32)
    bce = jnp.maximum(x, 0.0) - x * y + jnp.log1p(jnp.exp(-jnp.abs(x)))
    p = jax.nn.sigmoid(x)
    p_t = y * p + (1.0 - y) * (1.0 - p)
    af = y * alpha + (1.0 - y) * (1.0 - alpha)
    mf = (1.0 - p_t) ** gamma
    return jnp.mean(bce * af * mf)


if __name__ == "__main__":
    key = jax.random.PRNGKey(0)
    k1, k2 = jax.random.split(key)
    # NCHW logits and binary-ish targets (as in detection objectness/cls losses).
    pred = jax.random.normal(k1, (2, 4, 16, 16), dtype=jnp.float32)
    true = (jax.random.uniform(k2, (2, 4, 16, 16)) > 0.7).astype(jnp.float32)

    out = jax.block_until_ready(focal_loss(pred, true))
    ref = jax.block_until_ready(_focal_loss_ref(pred, true))
    assert jnp.allclose(out, ref, rtol=2e-5, atol=1e-6), (out, ref)
    print("KERNEL_OK")
</pallas_src>

<mosaic_0001>
module attributes {stable_mosaic.version = 11 : i64} {
  func.func @_focal_loss_kernel(%arg0: i32, %arg1: i32, %arg2: memref<16x128xf32, #tpu.memory_space<vmem>>, %arg3: memref<16x128xf32, #tpu.memory_space<vmem>>, %arg4: memref<8x128xf32, #tpu.memory_space<vmem>>) attributes {dimension_semantics = [#tpu.dimension_semantics<parallel>, #tpu.dimension_semantics<arbitrary>], iteration_bounds = array<i64: 2, 1>, scalar_prefetch = 0 : i64, scratch_operands = 0 : i64, tpu.core_type = #tpu.core_type<tc>, window_params = [{transform_indices = @transform_0, window_bounds = array<i64: 16, 128>}, {transform_indices = @transform_1, window_bounds = array<i64: 16, 128>}, {transform_indices = @transform_2, window_bounds = array<i64: 8, 128>}]} {
    %c0_i32 = arith.constant 0 : i32
    %0 = arith.cmpi eq, %arg1, %c0_i32 : i32
    %1 = arith.extui %0 : i1 to i32
    %c0_i32_0 = arith.constant 0 : i32
    %2 = arith.cmpi ne, %1, %c0_i32_0 : i32
    scf.if %2 {
      %cst_20 = arith.constant 0.000000e+00 : f32
      %62 = vector.broadcast %cst_20 : f32 to vector<8x128xf32>
      %c0_21 = arith.constant 0 : index
      %c0_22 = arith.constant 0 : index
      %63 = vector.load %arg4[%c0_21, %c0_22] : memref<8x128xf32, #tpu.memory_space<vmem>>, vector<8x128xf32>
      tpu.vector_store %arg4[%c0_21, %c0_22], %62 {strides = array<i32>} : memref<8x128xf32, #tpu.memory_space<vmem>>, vector<8x128xf32>,
    } else {
    }
    %c0 = arith.constant 0 : index
    %c0_1 = arith.constant 0 : index
    %3 = vector.load %arg2[%c0, %c0_1] : memref<16x128xf32, #tpu.memory_space<vmem>>, vector<16x128xf32>
    %c0_2 = arith.constant 0 : index
    %c0_3 = arith.constant 0 : index
    %4 = vector.load %arg3[%c0_2, %c0_3] : memref<16x128xf32, #tpu.memory_space<vmem>>, vector<16x128xf32>
    %5 = math.absf %3 : vector<16x128xf32>
    %cst = arith.constant 0.000000e+00 : f32
    %6 = vector.broadcast %cst : f32 to vector<16x128xf32>
    %7 = arith.subf %6, %5 : vector<16x128xf32>
    %8 = math.exp %7 : vector<16x128xf32>
    %cst_4 = arith.constant 0.000000e+00 : f32
    %9 = vector.broadcast %cst_4 : f32 to vector<16x128xf32>
    %10 = arith.maximumf %3, %9 : vector<16x128xf32>
    %11 = arith.mulf %3, %4 : vector<16x128xf32>
    %12 = arith.subf %10, %11 : vector<16x128xf32>
    %13 = math.log1p %8 : vector<16x128xf32>
    %14 = arith.addf %12, %13 : vector<16x128xf32>
    %cst_5 = arith.constant 1.000000e+00 : f32
    %15 = vector.broadcast %cst_5 : f32 to vector<16x128xf32>
    %16 = arith.addf %15, %8 : vector<16x128xf32>
    %cst_6 = arith.constant 1.000000e+00 : f32
    %17 = vector.broadcast %cst_6 : f32 to vector<16x128xf32>
    %18 = arith.divf %17, %16 : vector<16x128xf32>
    %cst_7 = arith.constant 0.000000e+00 : f32
    %19 = vector.broadcast %cst_7 : f32 to vector<16x128xf32>
    %20 = arith.cmpf oge, %3, %19 : vector<16x128xf32>
    %21 = arith.mulf %8, %18 : vector<16x128xf32>
    %22 = arith.select %20, %18, %21 : vector<16x128xi1>, vector<16x128xf32>
    %23 = arith.mulf %4, %22 : vector<16x128xf32>
    %cst_8 = arith.constant 1.000000e+00 : f32
    %24 = vector.broadcast %cst_8 : f32 to vector<16x128xf32>
    %25 = arith.subf %24, %4 : vector<16x128xf32>
    %cst_9 = arith.constant 1.000000e+00 : f32
    %26 = vector.broadcast %cst_9 : f32 to vector<16x128xf32>
    %27 = arith.subf %26, %22 : vector<16x128xf32>
    %28 = arith.mulf %25, %27 : vector<16x128xf32>
    %29 = arith.addf %23, %28 : vector<16x128xf32>
    %cst_10 = arith.constant 2.500000e-01 : f32
    %30 = vector.broadcast %cst_10 : f32 to vector<16x128xf32>
    %31 = arith.mulf %4, %30 : vector<16x128xf32>
    %cst_11 = arith.constant 1.000000e+00 : f32
    %32 = vector.broadcast %cst_11 : f32 to vector<16x128xf32>
    %33 = arith.subf %32, %4 : vector<16x128xf32>
    %cst_12 = arith.constant 7.500000e-01 : f32
    %34 = vector.broadcast %cst_12 : f32 to vector<16x128xf32>
    %35 = arith.mulf %33, %34 : vector<16x128xf32>
    %36 = arith.addf %31, %35 : vector<16x128xf32>
    %cst_13 = arith.constant 1.000000e+00 : f32
    %37 = vector.broadcast %cst_13 : f32 to vector<16x128xf32>
    %38 = arith.subf %37, %29 : vector<16x128xf32>
    %39 = math.sqrt %38 : vector<16x128xf32>
    %40 = arith.mulf %38, %39 : vector<16x128xf32>
    %41 = arith.mulf %14, %36 : vector<16x128xf32>
    %42 = arith.mulf %41, %40 : vector<16x128xf32>
    %43 = tpu.iota {dimensions = array<i32: 0>} : vector<16x128xi32>
    %44 = tpu.iota {dimensions = array<i32: 1>} : vector<16x128xi32>
    %c1_i32 = arith.constant 1 : i32
    %45 = arith.muli %arg0, %c1_i32 : i32
    %46 = arith.addi %45, %arg1 : i32
    %c16_i32 = arith.constant 16 : i32
    %47 = arith.muli %46, %c16_i32 : i32
    %48 = vector.broadcast %47 : i32 to vector<16x128xi32>
    %49 = arith.addi %48, %43 : vector<16x128xi32>
    %c128_i32 = arith.constant 128 : i32
    %50 = vector.broadcast %c128_i32 : i32 to vector<16x128xi32>
    %51 = arith.muli %49, %50 : vector<16x128xi32>
    %52 = arith.addi %51, %44 : vector<16x128xi32>
    %c2048_i32 = arith.constant 2048 : i32
    %53 = vector.broadcast %c2048_i32 : i32 to vector<16x128xi32>
    %54 = arith.cmpi slt, %52, %53 : vector<16x128xi32>
    %cst_14 = arith.constant 0.000000e+00 : f32
    %55 = vector.broadcast %cst_14 : f32 to vector<16x128xf32>
    %56 = arith.select %54, %42, %55 : vector<16x128xi1>, vector<16x128xf32>
    %c0_15 = arith.constant 0 : index
    %c0_16 = arith.constant 0 : index
    %57 = vector.load %arg4[%c0_15, %c0_16] : memref<8x128xf32, #tpu.memory_space<vmem>>, vector<8x128xf32>
    %58 = vector.shape_cast %56 : vector<16x128xf32> to vector<2x8x128xf32>
    %cst_17 = arith.constant dense<0.000000e+00> : vector<8x128xf32>
    %59 = vector.multi_reduction <add>, %58, %cst_17 [0] : vector<2x8x128xf32> to vector<8x128xf32>
    %60 = arith.addf %57, %59 : vector<8x128xf32>
    %c0_18 = arith.constant 0 : index
    %c0_19 = arith.constant 0 : index
    %61 = vector.load %arg4[%c0_18, %c0_19] : memref<8x128xf32, #tpu.memory_space<vmem>>, vector<8x128xf32>
    tpu.vector_store %arg4[%c0_18, %c0_19], %60 {strides = array<i32>} : memref<8x128xf32, #tpu.memory_space<vmem>>, vector<8x128xf32>,
    return
  }
  func.func @transform_0(%arg0: i32, %arg1: i32) -> (i32, i32) {
    %c1_i32 = arith.constant 1 : i32
    %0 = arith.muli %arg0, %c1_i32 : i32
    %1 = arith.addi %0, %arg1 : i32
    %c0_i32 = arith.constant 0 : i32
    %c0_i32_0 = arith.constant 0 : i32
    return %1, %c0_i32 : i32, i32
  }
  func.func @transform_1(%arg0: i32, %arg1: i32) -> (i32, i32) {
    %c1_i32 = arith.constant 1 : i32
    %0 = arith.muli %arg0, %c1_i32 : i32
    %1 = arith.addi %0, %arg1 : i32
    %c0_i32 = arith.constant 0 : i32
    %c0_i32_0 = arith.constant 0 : i32
    return %1, %c0_i32 : i32, i32
  }
  func.func @transform_2(%arg0: i32, %arg1: i32) -> (i32, i32) {
    %c0_i32 = arith.constant 0 : i32
    %c0_i32_0 = arith.constant 0 : i32
    return %arg0, %c0_i32 : i32, i32
  }
}

</mosaic_0001>

<llo_original>
// kernel: tpu_custom_call.1
$region0: #{tpu_custom_call.1}
  #allocation0 [shape = 'u32[]', space=smem, size = 0x4, offset = 0x4, fixed_abs, tag = 'smem constant byte address 0x4 - core index']
  #allocation1 [shape = 'u32[72,128]{1,0:T(1,128)}', space=vmem, size = 0x9000, scoped, tag = 'internal scratch']
  %s0 = inlined_call_operand.hbm [shape: f32[32,128], index: 0, kind: input, shape index: {}]
  %s1 = inlined_call_operand.hbm [shape: f32[32,128], index: 1, kind: input, shape index: {}]
  %s2 = inlined_call_operand.hbm [shape: f32[16,128], index: 2, kind: output, shape index: {}]
  %s3 = sld [smem:[#allocation0]]
  $region53: #{tpu_custom_call.1} parent=0
    _
  %s5 = ssub.s32 1, %s3
  %s6 = scalar_select 0, %s5, %s3
  $region1: #{tpu_custom_call.1} parent=0
    #allocation2 [shape = 'u8[16384]{0}', space=vmem, size = 0x4000, scoped, tag = 'input window, operand 0']
    #allocation3 [shape = 's32[2]{0}', space=sflag, size = 0x8, scoped, tag = 'scoped memory for tpu_custom_call.1']
    #allocation4 [shape = 's32[2]{0}', space=sflag, size = 0x8, scoped, tag = 'scoped memory for tpu_custom_call.1']
    #allocation5 [shape = 'u8[16384]{0}', space=vmem, size = 0x4000, scoped, tag = 'input window, operand 1']
    #allocation6 [shape = 's32[2]{0}', space=sflag, size = 0x8, scoped, tag = 'scoped memory for tpu_custom_call.1']
    #allocation7 [shape = 'u8[8192]{0}', space=vmem, size = 0x2000, scoped, tag = 'output window, operand 0']
    %7 = vsyncpa [#allocation3], 0
    %s8 = scalar_lea.sflag [#allocation3], 1
    %9 = vsyncpa %s8, 0
    %10 = vsyncpa [#allocation6], 0
    %s11 = scalar_lea.sflag [#allocation6], 1
    %12 = vsyncpa %s11, 0
    %13 = vsyncpa [#allocation4], 0
    %s14 = scalar_lea.sflag [#allocation4], 1
    %15 = vsyncpa %s14, 0
    loop: start=0, step=1, limit=4
    $region2: #{tpu_custom_call.1} parent=1 // loop_pre_header
      _
    $region3: #{tpu_custom_call.1} parent=1 // loop_header
      %s17 = sphi 0, %s21
      %p18 = scmp.ge.s32.totalorder %s17, 4
      %s24 = sphi 0, %s36
      %s25 = sphi 0, %s32
      %s26 = sphi 0, %s24
      %s27 = sphi 0, %s25
      %s28 = sphi 0, %s26
      %s29 = sphi 0, %s27
      %s41 = sphi 0, %s43
      %s44 = sphi 0, %s41
      %s45 = sphi 0, %s44
      %s61 = sphi 0, %s45
      %s69 = sphi 0, %s71
      %s72 = sphi 0, %s69
      %s73 = sphi 0, %s72
      %s89 = sphi 0, %s73
      %s95 = sphi 0, %s97
      %s98 = sphi 0, %s95
      %s99 = sphi 0, %s98
      %s115 = sphi 0, %s99
    $region4: #{tpu_custom_call.1} parent=1 // loop_header_branch
      %20 = sbr.rel (%p18) target = $region8
    $region5: #{tpu_custom_call.1} parent=1 // loop_body
      %s22 = ssub.s32 %s17, 1
      %s23 = ssub.s32 %s17, 2
      %s30 = sadd.s32 1, %s25
      %p31 = scmp.ge.s32.totalorder %s30, 1
      %s32 = scalar_select %p31, 0, %s30
      %s33 = sadd.s32 1, %s24
      %s34 = scalar_select %p31, %s33, %s24
      %p35 = scmp.ge.s32.totalorder %s34, 2
      %s36 = scalar_select %p35, 0, %s34
      %s37 = sadd.s32 %s24, %s25
      %s38 = sadd.s32 %s36, %s32
      %s39 = ssub.s32 %s37, %s38
      %p40 = scmp.eq.s32.totalorder %s39, 0
      %s42 = sadd.s32 %s41, 1
      %s43 = scalar_select %p40, %s41, %s42
      %p46 = pneg %p40
      %p47 = scmp.eq.s32.totalorder %s17, 1
      %p48 = por %p46, %p47
      %p49 = scmp.ne.s32.totalorder %s41, %s44
      %p50 = scmp.eq.s32.totalorder %s17, 0
      %p51 = por %p49, %p50
      %p52 = scmp.ne.s32.totalorder %s41, %s44
      %p53 = scmp.eq.s32.totalorder %s22, 1
      %p54 = por %p52, %p53
      %p55 = scmp.ne.s32.totalorder %s44, %s45
      %p56 = scmp.eq.s32.totalorder %s22, 0
      %p57 = por %p55, %p56
      %p58 = scmp.ne.s32.totalorder %s44, %s45
      %p59 = scmp.eq.s32.totalorder %s23, 1
      %p60 = por %p58, %p59
      %p62 = scmp.ne.s32.totalorder %s45, %s61
      %p63 = scmp.eq.s32.totalorder %s23, 0
      %p64 = por %p62, %p63
      %s65 = sadd.s32 %s24, %s25
      %s66 = sadd.s32 %s36, %s32
      %s67 = ssub.s32 %s65, %s66
      %p68 = scmp.eq.s32.totalorder %s67, 0
      %s70 = sadd.s32 %s69, 1
      %s71 = scalar_select %p68, %s69, %s70
      %p74 = pneg %p68
      %p75 = scmp.eq.s32.totalorder %s17, 1
      %p76 = por %p74, %p75
      %p77 = scmp.ne.s32.totalorder %s69, %s72
      %p78 = scmp.eq.s32.totalorder %s17, 0
      %p79 = por %p77, %p78
      %p80 = scmp.ne.s32.totalorder %s69, %s72
      %p81 = scmp.eq.s32.totalorder %s22, 1
      %p82 = por %p80, %p81
      %p83 = scmp.ne.s32.totalorder %s72, %s73
      %p84 = scmp.eq.s32.totalorder %s22, 0
      %p85 = por %p83, %p84
      %p86 = scmp.ne.s32.totalorder %s72, %s73
      %p87 = scmp.eq.s32.totalorder %s23, 1
      %p88 = por %p86, %p87
      %p90 = scmp.ne.s32.totalorder %s73, %s89
      %p91 = scmp.eq.s32.totalorder %s23, 0
      %p92 = por %p90, %p91
      %s93 = ssub.s32 %s24, %s36
      %p94 = scmp.eq.s32.totalorder %s93, 0
      %s96 = sadd.s32 %s95, 1
      %s97 = scalar_select %p94, %s95, %s96
      %p100 = pneg %p94
      %p101 = scmp.eq.s32.totalorder %s17, 1
      %p102 = por %p100, %p101
      %p103 = scmp.ne.s32.totalorder %s95, %s98
      %p104 = scmp.eq.s32.totalorder %s17, 0
      %p105 = por %p103, %p104
      %p106 = scmp.ne.s32.totalorder %s95, %s98
      %p107 = scmp.eq.s32.totalorder %s22, 1
      %p108 = por %p106, %p107
      %p109 = scmp.ne.s32.totalorder %s98, %s99
      %p110 = scmp.eq.s32.totalorder %s22, 0
      %p111 = por %p109, %p110
      %p112 = scmp.ne.s32.totalorder %s98, %s99
      %p113 = scmp.eq.s32.totalorder %s23, 1
      %p114 = por %p112, %p113
      %p116 = scmp.ne.s32.totalorder %s99, %s115
      %p117 = scmp.eq.s32.totalorder %s23, 0
      %p118 = por %p116, %p117
      %p119 = scmp.le.s32.totalorder 1, %s17
      %p120 = scmp.lt.s32.totalorder %s17, 3
      %p121 = pnand %p119, %p120
      %p122 = pneg %p121
      // Predicated region
      $region9: #{tpu_custom_call.1} parent=5 // pred_check
        _
      $region10: #{tpu_custom_call.1} parent=5 // pred_check_branch
        %124 = sbr.rel (%p121) target = $region12
      $region11: #{tpu_custom_call.1} parent=5 // pred_region
        %s125 = ssub.s32 %s17, 1
      $region12: #{tpu_custom_call.1} parent=5 // pred_fallthru
        _
      %p126 = scmp.lt.s32.totalorder %s17, 2
      // Predicated region
      $region13: #{tpu_custom_call.1} parent=5 // pred_check
        %p127 = pneg %p126
      $region14: #{tpu_custom_call.1} parent=5 // pred_check_branch
        %129 = sbr.rel (%p127) target = $region16
      $region15: #{tpu_custom_call.1} parent=5 // pred_region
        // Predicated region
        $region17: #{tpu_custom_call.1} parent=15 // pred_check
          %p130 = pneg %p51
        $region18: #{tpu_custom_call.1} parent=15 // pred_check_branch
          %132 = sbr.rel (%p130) target = $region20
        $region19: #{tpu_custom_call.1} parent=15 // pred_region
          %s133 = sand.u32 %s41, 1
          %s134 = scalar_lea.sflag [#allocation3], %s133
          %s135 = sand.u32 %s41, 1
          %s136 = smul.addr %s135, 16
          %s137 = scalar_lea.vmem [#allocation2], %s136
          %s138 = sadd.s32 %s24, %s25
          %s139 = smul.u32 2, %s138
          %141 = vsyncadd %s134, 0
          %s142 = smul.addr %s139, 8
          %s143 = scalar_lea.hbm %s0, %s142
          %s144 = sshll.u32 %s143, 4
          %s145 = int_to_ptr.hbm [resolvable:$true] %s144
          %s146 = sshll.u32 %s137, 4
          %s147 = int_to_ptr.vmem [resolvable:$true] %s146
          %152 = dma.hbm_to_vmem [thread:$0]  %s145, 256, %s147, %s134, 128, 128, 8
        $region20: #{tpu_custom_call.1} parent=15 // pred_fallthru
          _
        // Predicated region
        $region21: #{tpu_custom_call.1} parent=15 // pred_check
          %p153 = pneg %p79
        $region22: #{tpu_custom_call.1} parent=15 // pred_check_branch
          %155 = sbr.rel (%p153) target = $region24
        $region23: #{tpu_custom_call.1} parent=15 // pred_region
          %s156 = sand.u32 %s69, 1
          %s157 = scalar_lea.sflag [#allocation6], %s156
          %s158 = sand.u32 %s69, 1
          %s159 = smul.addr %s158, 16
          %s160 = scalar_lea.vmem [#allocation5], %s159
          %s161 = sadd.s32 %s24, %s25
          %s162 = smul.u32 2, %s161
          %164 = vsyncadd %s157, 0
          %s165 = smul.addr %s162, 8
          %s166 = scalar_lea.hbm %s1, %s165
          %s167 = sshll.u32 %s166, 4
          %s168 = int_to_ptr.hbm [resolvable:$true] %s167
          %s169 = sshll.u32 %s160, 4
          %s170 = int_to_ptr.vmem [resolvable:$true] %s169
          %175 = dma.hbm_to_vmem [thread:$0]  %s168, 256, %s170, %s157, 128, 128, 8
        $region24: #{tpu_custom_call.1} parent=15 // pred_fallthru
          _
      $region16: #{tpu_custom_call.1} parent=5 // pred_fallthru
        _
      %p176 = scmp.le.s32.totalorder 1, %s17
      %p177 = scmp.lt.s32.totalorder %s17, 3
      %p178 = pnand %p176, %p177
      %p179 = pneg %p178
      // Predicated region
      $region25: #{tpu_custom_call.1} parent=5 // pred_check
        _
      $region26: #{tpu_custom_call.1} parent=5 // pred_check_branch
        %181 = sbr.rel (%p178) target = $region28
      $region27: #{tpu_custom_call.1} parent=5 // pred_region
        %s182 = ssub.s32 %s17, 1
        %s183 = sand.u32 %s44, 1
        %s184 = scalar_lea.sflag [#allocation3], %s183
        %s185 = sand.u32 %s44, 1
        %s186 = smul.addr %s185, 16
        %s187 = scalar_lea.vmem [#allocation2], %s186
        // Predicated region
        $region29: #{tpu_custom_call.1} parent=27 // pred_check
          %p188 = pneg %p57
        $region30: #{tpu_custom_call.1} parent=27 // pred_check_branch
          %190 = sbr.rel (%p188) target = $region32
        $region31: #{tpu_custom_call.1} parent=27 // pred_region
          %192 = dma.done %s184, 256
        $region32: #{tpu_custom_call.1} parent=27 // pred_fallthru
          _
        %s193 = sand.u32 %s72, 1
        %s194 = scalar_lea.sflag [#allocation6], %s193
        %s195 = sand.u32 %s72, 1
        %s196 = smul.addr %s195, 16
        %s197 = scalar_lea.vmem [#allocation5], %s196
        // Predicated region
        $region33: #{tpu_custom_call.1} parent=27 // pred_check
          %p198 = pneg %p85
        $region34: #{tpu_custom_call.1} parent=27 // pred_check_branch
          %200 = sbr.rel (%p198) target = $region36
        $region35: #{tpu_custom_call.1} parent=27 // pred_region
          %202 = dma.done %s194, 256
        $region36: #{tpu_custom_call.1} parent=27 // pred_fallthru
          _
        %s203 = sand.u32 %s44, 1
        %s204 = scalar_lea.sflag [#allocation3], %s203
        %s205 = sand.u32 %s44, 1
        %s206 = smul.addr %s205, 16
        %s207 = scalar_lea.vmem [#allocation2], %s206
        %p208 = pneg %p57
        %p209 = pneg %p54
        %s210 = sand.u32 %s72, 1
        %s211 = scalar_lea.sflag [#allocation6], %s210
        %s212 = sand.u32 %s72, 1
        %s213 = smul.addr %s212, 16
        %s214 = scalar_lea.vmem [#allocation5], %s213
        %p215 = pneg %p85
        %p216 = pneg %p82
        %p217 = pneg %p111
        %p218 = pneg %p108
        %s219 = sand.u32 %s98, 1
        %s220 = scalar_lea.sflag [#allocation4], %s219
        %s221 = sand.u32 %s98, 1
        %s222 = smul.addr %s221, 8
        %s223 = scalar_lea.vmem [#allocation7], %s222
        %s224 = sadd.s32 %s26, %s27
        %s225 = smul.u32 2, %s224
        %s226 = sadd.s32 %s26, %s27
        %s227 = smul.u32 2, %s226
        %p228 = scmp.eq.s32.totalorder %s27, 0
        // Predicated region
        $region37: #{tpu_custom_call.1} parent=27 // pred_check
          %p229 = pneg %p228
        $region38: #{tpu_custom_call.1} parent=27 // pred_check_branch
          %231 = sbr.rel (%p229) target = $region40
        $region39: #{tpu_custom_call.1} parent=27 // pred_region
          %232 = vst [vmem:[%s223] sm:$0xff] 0.0
        $region40: #{tpu_custom_call.1} parent=27 // pred_fallthru
          _
        %v233 = vld [vmem:[%s187] sm:$0xff]
        %v234 = vld [vmem:[%s187 + $0x8] sm:$0xff]
        %v235 = vld [vmem:[%s197] sm:$0xff]
        %v236 = vld [vmem:[%s197 + $0x8] sm:$0xff]
        %v237 = vand.u32 2147483647, %v233
        %v238 = vand.u32 2147483647, %v234
        %v239 = vsub.f32 0.0, %v237
        %v240 = vsub.f32 0.0, %v238
        %v241 = vmul.f32 %v239, 1.442695
        %v242 = vpow.pop %v241
        %v243 = vmul.f32 %v240, 1.442695
        %v244 = vpow.pop %v243
        %v245 = vmax.f32 %v233, 0.0
        %v246 = vmax.f32 %v234, 0.0
        %v247 = vmul.f32 %v233, %v235
        %v248 = vmul.f32 %v234, %v236
        %v249 = vsub.f32 %v245, %v247
        %v250 = vsub.f32 %v246, %v248
        %v251 = vadd.f32 %v242, 1.0
        %v252 = vlog2.pop %v251
        %v253 = vmul.f32 %v252, 0.6931472
        %v254 = vmul.f32 -0.5, %v242
        %v255 = vadd.f32 %v254, 1.0
        %v256 = vmul.f32 %v255, %v242
        %v257 = vand.u32 2147483647, %v242
        %vm258 = vcmp.lt.f32.partialorder %v257, 0.0004427343
        %v259 = vsel %vm258, %v256, %v253
        %v260 = vadd.f32 %v244, 1.0
        %v261 = vlog2.pop %v260
        %v262 = vmul.f32 %v261, 0.6931472
        %v263 = vmul.f32 -0.5, %v244
        %v264 = vadd.f32 %v263, 1.0
        %v265 = vmul.f32 %v264, %v244
        %v266 = vand.u32 2147483647, %v244
        %vm267 = vcmp.lt.f32.partialorder %v266, 0.0004427343
        %v268 = vsel %vm267, %v265, %v262
        %v269 = vadd.f32 %v249, %v259
        %v270 = vadd.f32 %v250, %v268
        %v271 = vadd.f32 %v242, 1.0
        %v272 = vadd.f32 %v244, 1.0
        %v273 = vrcp.pop %v271
        %v274 = vmul.f32 %v271, %v273
        %v275 = vsub.f32 1.0, %v274
        %v276 = vmul.f32 %v273, %v275
        %v277 = vadd.f32 %v273, %v276
        %vm278 = vweird.f32 %v271
        %vm279 = vweird.f32 %v273
        %vm280 = vmor %vm278, %vm279
        %v281 = vsel %vm280, %v273, %v277
        %v282 = vand.u32 2147483647, %v271
        %vm283 = vcmp.eq.f32.partialorder %v282, 8.507059e+37
        %v284 = vand.u32 %v271, 2147483648
        %v285 = vor.u32 1.1754944e-38, %v284
        %v286 = vsel %vm283, %v285, %v281
        %v287 = vmul.f32 1.0, %v286
        %v288 = vrcp.pop %v272
        %v289 = vmul.f32 %v272, %v288
        %v290 = vsub.f32 1.0, %v289
        %v291 = vmul.f32 %v288, %v290
        %v292 = vadd.f32 %v288, %v291
        %vm293 = vweird.f32 %v272
        %vm294 = vweird.f32 %v288
        %vm295 = vmor %vm293, %vm294
        %v296 = vsel %vm295, %v288, %v292
        %v297 = vand.u32 2147483647, %v272
        %vm298 = vcmp.eq.f32.partialorder %v297, 8.507059e+37
        %v299 = vand.u32 %v272, 2147483648
        %v300 = vor.u32 1.1754944e-38, %v299
        %v301 = vsel %vm298, %v300, %v296
        %v302 = vmul.f32 1.0, %v301
        %vm303 = vcmp.ge.f32.partialorder %v233, 0.0
        %vm304 = vcmp.ge.f32.partialorder %v234, 0.0
        %v305 = vmul.f32 %v242, %v287
        %v306 = vmul.f32 %v244, %v302
        %v307 = vsel %vm303, %v287, %v305
        %v308 = vsel %vm304, %v302, %v306
        %v309 = vmul.f32 %v235, %v307
        %v310 = vmul.f32 %v236, %v308
        %v311 = vsub.f32 1.0, %v235
        %v312 = vsub.f32 1.0, %v236
        %v313 = vsub.f32 1.0, %v307
        %v314 = vsub.f32 1.0, %v308
        %v315 = vmul.f32 %v311, %v313
        %v316 = vmul.f32 %v312, %v314
        %v317 = vadd.f32 %v309, %v315
        %v318 = vadd.f32 %v310, %v316
        %v319 = vmul.f32 %v235, 0.25
        %v320 = vmul.f32 %v236, 0.25
        %v321 = vmul.f32 %v311, 0.75
        %v322 = vmul.f32 %v312, 0.75
        %v323 = vadd.f32 %v319, %v321
        %v324 = vadd.f32 %v320, %v322
        %v325 = vsub.f32 1.0, %v317
        %v326 = vsub.f32 1.0, %v318
        %v327 = vrsqrt.pop %v325
        %v328 = vmul.f32 %v327, %v325
        %v329 = vmul.f32 %v328, %v327
        %v330 = vmul.f32 0.5, %v329
        %v331 = vsub.f32 1.5, %v330
        %v332 = vmul.f32 %v327, %v331
        %v333 = vmul.f32 %v325, %v332
        %vm334 = vcmp.eq.f32.partialorder %v325, inf
        %v335 = vsel %vm334, %v325, %v333
        %vm336 = vcmp.eq.f32.partialorder %v325, 0.0
        %v337 = vand.u32 %v325, 2147483648
        %v338 = vsel %vm336, %v337, %v335
        %v339 = vrsqrt.pop %v326
        %v340 = vmul.f32 %v339, %v326
        %v341 = vmul.f32 %v340, %v339
        %v342 = vmul.f32 0.5, %v341
        %v343 = vsub.f32 1.5, %v342
        %v344 = vmul.f32 %v339, %v343
        %v345 = vmul.f32 %v326, %v344
        %vm346 = vcmp.eq.f32.partialorder %v326, inf
        %v347 = vsel %vm346, %v326, %v345
        %vm348 = vcmp.eq.f32.partialorder %v326, 0.0
        %v349 = vand.u32 %v326, 2147483648
        %v350 = vsel %vm348, %v349, %v347
        %v351 = vmul.f32 %v325, %v338
        %v352 = vmul.f32 %v326, %v350
        %v353 = vmul.f32 %v269, %v323
        %v354 = vmul.f32 %v270, %v324
        %v355 = vmul.f32 %v353, %v351
        %v356 = vmul.f32 %v354, %v352
        %v357 = vlaneseq
        %v358 = vshrl.u32 %v357, 7
        %v359 = vadd.s32 %v358, 8
        %v360 = vlaneseq
        %v361 = vand.u32 %v360, 127
        %s362 = sadd.s32 %s26, %s27
        %s363 = smul.u32 %s362, 16
        %v364 = vstv %s363
        %v365 = vadd.s32 %v364, %v358
        %v366 = vadd.s32 %v364, %v359
        %v367 = vmul.u32 %v365, 128
        %v368 = vmul.u32 %v366, 128
        %v369 = vadd.s32 %v367, %v361
        %v370 = vadd.s32 %v368, %v361
        %vm371 = vcmp.lt.s32.totalorder %v369, 2048
        %vm372 = vcmp.lt.s32.totalorder %v370, 2048
        %v373 = vsel %vm371, %v355, 0.0
        %v374 = vsel %vm372, %v356, 0.0
        %v375 = vld [vmem:[%s223] sm:$0xff]
        %v376 = vadd.f32 %v373, %v374
        %v377 = vadd.f32 %v375, %v376
        %378 = vst [vmem:[%s223] sm:$0xff] %v377
        %s379 = sand.u32 %s98, 1
        %s380 = scalar_lea.sflag [#allocation4], %s379
        %s381 = sand.u32 %s98, 1
        %s382 = smul.addr %s381, 8
        %s383 = scalar_lea.vmem [#allocation7], %s382
        // Predicated region
        $region41: #{tpu_custom_call.1} parent=27 // pred_check
          %p384 = pneg %p108
        $region42: #{tpu_custom_call.1} parent=27 // pred_check_branch
          %386 = sbr.rel (%p384) target = $region44
        $region43: #{tpu_custom_call.1} parent=27 // pred_region
          %388 = vsyncadd %s380, 0
          %s389 = smul.addr %s26, 8
          %s390 = scalar_lea.hbm %s2, %s389
          %s392 = sshll.u32 %s383, 4
          %s393 = int_to_ptr.vmem [resolvable:$true] %s392
          %s394 = sshll.u32 %s390, 4
          %s395 = int_to_ptr.hbm [resolvable:$true] %s394
          %397 = dma.vmem_to_hbm [thread:$0]  %s393, 128, %s395, %s380
        $region44: #{tpu_custom_call.1} parent=27 // pred_fallthru
          _
      $region28: #{tpu_custom_call.1} parent=5 // pred_fallthru
        _
      %p398 = scmp.le.s32.totalorder 2, %s17
      // Predicated region
      $region45: #{tpu_custom_call.1} parent=5 // pred_check
        %p399 = pneg %p398
      $region46: #{tpu_custom_call.1} parent=5 // pred_check_branch
        %401 = sbr.rel (%p399) target = $region48
      $region47: #{tpu_custom_call.1} parent=5 // pred_region
        %s402 = ssub.s32 %s17, 2
        // Predicated region
        $region49: #{tpu_custom_call.1} parent=47 // pred_check
          %p403 = pneg %p114
        $region50: #{tpu_custom_call.1} parent=47 // pred_check_branch
          %405 = sbr.rel (%p403) target = $region52
        $region51: #{tpu_custom_call.1} parent=47 // pred_region
          %s406 = sand.u32 %s99, 1
          %s407 = scalar_lea.sflag [#allocation4], %s406
          %s408 = sand.u32 %s99, 1
          %s409 = smul.addr %s408, 8
          %s410 = scalar_lea.vmem [#allocation7], %s409
          %412 = dma.done %s407, 128
        $region52: #{tpu_custom_call.1} parent=47 // pred_fallthru
          _
      $region48: #{tpu_custom_call.1} parent=5 // pred_fallthru
        _
    $region6: #{tpu_custom_call.1} parent=1 // loop_footer
      %s21 = sadd.s32 1, %s17
    $region7: #{tpu_custom_call.1} parent=1 // loop_footer_branch
      %16 = sbr.rel target = $region3
    $region8: #{tpu_custom_call.1} parent=1 // loop_exit
      _
    %413 = vsyncpa [#allocation3], 1
    %s414 = scalar_lea.sflag [#allocation3], 1
    %415 = vsyncpa %s414, 1
    %416 = vsyncpa [#allocation6], 1
    %s417 = scalar_lea.sflag [#allocation6], 1
    %418 = vsyncpa %s417, 1
    %419 = vsyncpa [#allocation4], 1
    %s420 = scalar_lea.sflag [#allocation4], 1
    %421 = vsyncpa %s420, 1

</llo_original>
